<compile_context>
chip_gen: v7x
topology: tpu7x:2x2x1
jax: 0.10.0
libtpu: 0.0.40
codegen_flags: <defaults>
</compile_context>

<pallas_src>
import jax
import jax.numpy as jnp
from jax.experimental import pallas as pl
from jax.experimental.pallas import tpu as pltpu

_N_OUT_PAD = 8  # classifier dim (2) padded to a full sublane group


def _round_up(x, m):
    return ((x + m - 1) // m) * m


def _choose_tile(batch, block_b):
    """Pick (batch_tile, num_blocks).

    Small batches: one full-array block (no (8,128) constraint, no padding).
    Large batches: 128-aligned tiles (batch sits on output lanes), at least
    two grid steps so a v7x megacore can shard the "parallel" batch axis.
    """
    if batch < 256:
        return batch, 1
    tb = min(block_b, _round_up(pl.cdiv(batch, 2), 128))
    tb = max(128, (tb // 128) * 128)
    return tb, pl.cdiv(batch, tb)


def _mlp_kernel(x_ref, w1_ref, b1_ref, w2t_ref, b2t_ref, o_ref):
    # x_ref:   (TB, D)  f32   w1_ref:  (D, H)  bf16   b1_ref:  (1, H)  f32
    # w2t_ref: (8, H)   bf16  b2t_ref: (8, 1)  f32    o_ref:   (8, TB) f32
    # Hidden layer in natural (batch, feature) layout: bf16 MXU, f32 acc.
    h = jnp.dot(x_ref[...].astype(jnp.bfloat16), w1_ref[...],
                preferred_element_type=jnp.float32)           # (TB, H)
    h = jnp.maximum(h + b1_ref[...], 0.0)                     # bias + ReLU (f32, VPU)
    # Switch to (feature, batch) so the tiny classifier output is written as a
    # lane-dense (8, TB) block (32 B/row of HBM writeback). The transpose is
    # XLU work hidden under the HBM-bound pipeline.
    h_t = h.T.astype(jnp.bfloat16)                            # (H, TB)
    logits_t = jnp.dot(w2t_ref[...], h_t,
                       preferred_element_type=jnp.float32)    # (8, TB)
    o_ref[...] = logits_t + b2t_ref[...]                      # padded rows stay = pad bias (0)


def prepare_params(w1, b1, w2, b2):
    """One-time parameter prep, hoisted out of the per-forward hot path.

    w1: (D, H), b1: (H,), w2: (H, n_out), b2: (n_out,)  [PyTorch Linear layout,
    already transposed to (in, out) for w]. Returns kernel-ready operands.
    """
    D, H = w1.shape
    n_out = w2.shape[1]
    w1b = jnp.asarray(w1, jnp.float32).astype(jnp.bfloat16)               # (D, H)  bf16
    b1f = jnp.asarray(b1, jnp.float32).reshape(1, H)                      # (1, H)  f32
    w2t = jnp.zeros((_N_OUT_PAD, H), jnp.float32)
    w2t = w2t.at[:n_out].set(jnp.asarray(w2, jnp.float32).T)              # (8, H)
    w2t = w2t.astype(jnp.bfloat16)
    b2t = jnp.zeros((_N_OUT_PAD, 1), jnp.float32)
    b2t = b2t.at[:n_out, 0].set(jnp.asarray(b2, jnp.float32).reshape(-1))  # (8, 1)
    return w1b, b1f, w2t, b2t, n_out


def emotion_classifier_forward(x, params, *, block_b=2048):
    """Fused Linear->ReLU->Linear forward. x: (B, D) f32 -> (B, 2) f32 logits."""
    w1b, b1f, w2t, b2t, n_out = params
    B, D = x.shape
    H = w1b.shape[1]
    if x.dtype != jnp.float32:
        x = x.astype(jnp.float32)

    TB, nblk = _choose_tile(B, block_b)

    batch_in = lambda i: (i, 0)     # x streams over the batch grid (sublanes)
    batch_out = lambda i: (0, i)    # transposed logits: batch on lanes
    const = lambda i: (0, 0)        # weights/biases stay VMEM-resident

    flops = 2 * B * (D * H + H * _N_OUT_PAD)
    bytes_accessed = (B * D * 4                      # x (f32) in
                      + B * _N_OUT_PAD * 4           # transposed logits (f32) out
                      + D * H * 2 + _N_OUT_PAD * H * 2   # weights (bf16)
                      + (H + _N_OUT_PAD) * 4)            # biases (f32)

    out_t = pl.pallas_call(
        _mlp_kernel,
        out_shape=jax.ShapeDtypeStruct((_N_OUT_PAD, B), jnp.float32),
        grid=(nblk,),
        in_specs=[
            pl.BlockSpec((TB, D), batch_in),           # x (f32, cast in kernel)
            pl.BlockSpec((D, H), const),               # W1  bf16
            pl.BlockSpec((1, H), const),               # b1  f32
            pl.BlockSpec((_N_OUT_PAD, H), const),      # W2^T (padded) bf16
            pl.BlockSpec((_N_OUT_PAD, 1), const),      # b2   (padded) f32
        ],
        out_specs=pl.BlockSpec((_N_OUT_PAD, TB), batch_out),
        compiler_params=pltpu.CompilerParams(
            dimension_semantics=("parallel",)),
        cost_estimate=pl.CostEstimate(flops=flops, transcendentals=0,
                                      bytes_accessed=bytes_accessed),
    )(x, w1b, b1f, w2t, b2t)

    # Tiny (2, B) -> (B, 2) slice/transpose over 8*B bytes — negligible.
    return out_t[:n_out].T


def init_params(key, input_size, hidden_size=128, num_classes=2):
    """Deterministic synthetic init (PyTorch-like uniform fan-in scaling)."""
    k1, k2, k3, k4 = jax.random.split(key, 4)
    bound1 = 1.0 / (input_size ** 0.5)
    bound2 = 1.0 / (hidden_size ** 0.5)
    w1 = jax.random.uniform(k1, (input_size, hidden_size), jnp.float32,
                            -bound1, bound1)
    b1 = jax.random.uniform(k2, (hidden_size,), jnp.float32, -bound1, bound1)
    w2 = jax.random.uniform(k3, (hidden_size, num_classes), jnp.float32,
                            -bound2, bound2)
    b2 = jax.random.uniform(k4, (num_classes,), jnp.float32, -bound2, bound2)
    return w1, b1, w2, b2


if __name__ == "__main__":
    key = jax.random.PRNGKey(0)
    batch, input_size, hidden_size = 8, 32, 128

    kx, kp = jax.random.split(key)
    x = jax.random.normal(kx, (batch, input_size), jnp.float32)
    w1, b1, w2, b2 = init_params(kp, input_size, hidden_size)

    params = prepare_params(w1, b1, w2, b2)   # one-time prep, outside hot path
    logits = emotion_classifier_forward(x, params)
    logits = jax.block_until_ready(logits)
    assert logits.shape == (batch, 2)

    # Reference mirroring the kernel's dtype staging (bf16 MXU operands,
    # f32 accumulation) -> tight tolerance.
    xb = x.astype(jnp.bfloat16).astype(jnp.float32)
    w1b32 = w1.astype(jnp.bfloat16).astype(jnp.float32)
    w2b32 = w2.astype(jnp.bfloat16).astype(jnp.float32)
    h_ref = jnp.maximum(xb @ w1b32 + b1, 0.0)
    ref = h_ref.astype(jnp.bfloat16).astype(jnp.float32) @ w2b32 + b2
    assert jnp.allclose(logits, ref, atol=1e-3, rtol=1e-3)

    # Sanity check against pure-f32 math (loose tolerance for bf16 operands).
    ref_f32 = jnp.maximum(x @ w1 + b1, 0.0) @ w2 + b2
    assert jnp.allclose(logits, ref_f32, atol=5e-2, rtol=5e-2)

    print("KERNEL_OK")
</pallas_src>

<mosaic_0001>
module attributes {stable_mosaic.version = 11 : i64} {
  func.func @_mlp_kernel(%arg0: i32, %arg1: memref<8x32xf32, #tpu.memory_space<vmem>>, %arg2: memref<32x128xbf16, #tpu.memory_space<vmem>>, %arg3: memref<1x128xf32, #tpu.memory_space<vmem>>, %arg4: memref<8x128xbf16, #tpu.memory_space<vmem>>, %arg5: memref<8x1xf32, #tpu.memory_space<vmem>>, %arg6: memref<8x8xf32, #tpu.memory_space<vmem>>) attributes {dimension_semantics = [#tpu.dimension_semantics<parallel>], iteration_bounds = array<i64: 1>, scalar_prefetch = 0 : i64, scratch_operands = 0 : i64, tpu.core_type = #tpu.core_type<tc>, window_params = [{transform_indices = @transform_0, window_bounds = array<i64: 8, 32>}, {pipeline_mode = #tpu.pipeline_mode<synchronous>, transform_indices = @transform_1, window_bounds = array<i64: 32, 128>}, {pipeline_mode = #tpu.pipeline_mode<synchronous>, transform_indices = @transform_2, window_bounds = array<i64: 1, 128>}, {pipeline_mode = #tpu.pipeline_mode<synchronous>, transform_indices = @transform_3, window_bounds = array<i64: 8, 128>}, {pipeline_mode = #tpu.pipeline_mode<synchronous>, transform_indices = @transform_4, window_bounds = array<i64: 8, 1>}, {transform_indices = @transform_5, window_bounds = array<i64: 8, 8>}]} {
    %c0 = arith.constant 0 : index
    %c0_0 = arith.constant 0 : index
    %0 = vector.load %arg1[%c0, %c0_0] : memref<8x32xf32, #tpu.memory_space<vmem>>, vector<8x32xf32>
    %1 = arith.truncf %0 : vector<8x32xf32> to vector<8x32xbf16>
    %c0_1 = arith.constant 0 : index
    %c0_2 = arith.constant 0 : index
    %2 = vector.load %arg2[%c0_1, %c0_2] : memref<32x128xbf16, #tpu.memory_space<vmem>>, vector<32x128xbf16>
    %cst = arith.constant dense<0.000000e+00> : vector<8x128xf32>
    %3 = tpu.matmul %1, %2, %cst {dimension_numbers = #tpu.dot_dimension_numbers<[1], [0], [0], [1], [0, 0, 1, 1], [], []>} : vector<8x32xbf16>, vector<32x128xbf16>, vector<8x128xf32> -> vector<8x128xf32>
    %c0_3 = arith.constant 0 : index
    %c0_4 = arith.constant 0 : index
    %4 = vector.load %arg3[%c0_3, %c0_4] : memref<1x128xf32, #tpu.memory_space<vmem>>, vector<1x128xf32>
    %5 = vector.broadcast %4 : vector<1x128xf32> to vector<8x128xf32>
    %6 = arith.addf %3, %5 : vector<8x128xf32>
    %cst_5 = arith.constant 0.000000e+00 : f32
    %7 = vector.broadcast %cst_5 : f32 to vector<8x128xf32>
    %8 = arith.maximumf %6, %7 : vector<8x128xf32>
    %9 = tpu.transpose %8, [1, 0] : vector<8x128xf32> -> vector<128x8xf32>
    %10 = arith.truncf %9 : vector<128x8xf32> to vector<128x8xbf16>
    %c0_6 = arith.constant 0 : index
    %c0_7 = arith.constant 0 : index
    %11 = vector.load %arg4[%c0_6, %c0_7] : memref<8x128xbf16, #tpu.memory_space<vmem>>, vector<8x128xbf16>
    %cst_8 = arith.constant dense<0.000000e+00> : vector<8x8xf32>
    %12 = tpu.matmul %11, %10, %cst_8 {dimension_numbers = #tpu.dot_dimension_numbers<[1], [0], [0], [1], [0, 0, 1, 1], [], []>} : vector<8x128xbf16>, vector<128x8xbf16>, vector<8x8xf32> -> vector<8x8xf32>
    %c0_9 = arith.constant 0 : index
    %c0_10 = arith.constant 0 : index
    %13 = vector.load %arg5[%c0_9, %c0_10] : memref<8x1xf32, #tpu.memory_space<vmem>>, vector<8x1xf32>
    %14 = vector.broadcast %13 : vector<8x1xf32> to vector<8x8xf32>
    %15 = arith.addf %12, %14 : vector<8x8xf32>
    %c0_11 = arith.constant 0 : index
    %c0_12 = arith.constant 0 : index
    %16 = vector.load %arg6[%c0_11, %c0_12] : memref<8x8xf32, #tpu.memory_space<vmem>>, vector<8x8xf32>
    tpu.vector_store %arg6[%c0_11, %c0_12], %15 {strides = array<i32>} : memref<8x8xf32, #tpu.memory_space<vmem>>, vector<8x8xf32>,
    return
  }
  func.func @transform_0(%arg0: i32) -> (i32, i32) {
    %c0_i32 = arith.constant 0 : i32
    %c0_i32_0 = arith.constant 0 : i32
    return %arg0, %c0_i32 : i32, i32
  }
  func.func @transform_1(%arg0: i32) -> (i32, i32) {
    %c0_i32 = arith.constant 0 : i32
    %c0_i32_0 = arith.constant 0 : i32
    %c0_i32_1 = arith.constant 0 : i32
    return %c0_i32, %c0_i32_0 : i32, i32
  }
  func.func @transform_2(%arg0: i32) -> (i32, i32) {
    %c0_i32 = arith.constant 0 : i32
    %c0_i32_0 = arith.constant 0 : i32
    %c0_i32_1 = arith.constant 0 : i32
    return %c0_i32, %c0_i32_0 : i32, i32
  }
  func.func @transform_3(%arg0: i32) -> (i32, i32) {
    %c0_i32 = arith.constant 0 : i32
    %c0_i32_0 = arith.constant 0 : i32
    %c0_i32_1 = arith.constant 0 : i32
    return %c0_i32, %c0_i32_0 : i32, i32
  }
  func.func @transform_4(%arg0: i32) -> (i32, i32) {
    %c0_i32 = arith.constant 0 : i32
    %c0_i32_0 = arith.constant 0 : i32
    %c0_i32_1 = arith.constant 0 : i32
    return %c0_i32, %c0_i32_0 : i32, i32
  }
  func.func @transform_5(%arg0: i32) -> (i32, i32) {
    %c0_i32 = arith.constant 0 : i32
    %c0_i32_0 = arith.constant 0 : i32
    return %c0_i32, %arg0 : i32, i32
  }
}

</mosaic_0001>

<llo_original>
// kernel: tpu_custom_call.1
$region0: #{tpu_custom_call.1}
  #allocation0 [shape = 'u32[]', space=smem, size = 0x4, offset = 0x4, fixed_abs, tag = 'smem constant byte address 0x4 - core index']
  #allocation1 [shape = 'u32[144,128]{1,0:T(1,128)}', space=vmem, size = 0x12000, scoped, tag = 'internal scratch']
  %s0 = inlined_call_operand.vmem [shape: f32[8,32], index: 0, kind: input, shape index: {}]
  %s1 = inlined_call_operand.hbm [shape: bf16[32,128], index: 1, kind: input, shape index: {}]
  %s2 = inlined_call_operand.vmem [shape: f32[1,128], index: 2, kind: input, shape index: {}]
  %s3 = inlined_call_operand.vmem [shape: bf16[8,128], index: 3, kind: input, shape index: {}]
  %s4 = inlined_call_operand.vmem [shape: f32[8,1], index: 4, kind: input, shape index: {}]
  %s5 = inlined_call_operand.hbm [shape: f32[8,8], index: 5, kind: output, shape index: {}]
  %s6 = sld [smem:[#allocation0]]
  $region34: #{tpu_custom_call.1} parent=0
    _
  %s8 = ssub.s32 1, %s6
  %s9 = scalar_select 0, %s8, %s6
  $region1: #{tpu_custom_call.1} parent=0
    #allocation2 [shape = 'u8[8192]{0}', space=vmem, size = 0x2000, scoped, tag = 'input window, operand 1, single buffered']
    #allocation3 [shape = 's32[1]{0}', space=sflag, size = 0x4, scoped, tag = 'scoped memory for tpu_custom_call.1']
    #allocation4 [shape = 's32[1]{0}', space=sflag, size = 0x4, scoped, tag = 'scoped memory for tpu_custom_call.1']
    #allocation5 [shape = 'u8[4096]{0}', space=vmem, size = 0x1000, scoped, tag = 'output window, operand 0, single buffered']
    %10 = vsyncpa [#allocation3], 0
    %11 = vsyncpa [#allocation4], 0
    // Predicated region
    $region2: #{tpu_custom_call.1} parent=1 // pred_check
      _
    $region3: #{tpu_custom_call.1} parent=1 // pred_check_branch
      %13 = sbr.rel (0) target = $region5
    $region4: #{tpu_custom_call.1} parent=1 // pred_region
      _
    $region5: #{tpu_custom_call.1} parent=1 // pred_fallthru
      _
    // Predicated region
    $region6: #{tpu_custom_call.1} parent=1 // pred_check
      _
    $region7: #{tpu_custom_call.1} parent=1 // pred_check_branch
      %15 = sbr.rel (0) target = $region9
    $region8: #{tpu_custom_call.1} parent=1 // pred_region
      %s17 = ssub.s32 256, 256
      %18 = vsyncadd [#allocation3], %s17
      %s19 = sshll.u32 [#allocation2], 4
      %s20 = int_to_ptr.vmem [resolvable:$true] %s19
      %25 = dma.hbm_to_vmem [thread:$0]  %s1, 256, %s20, [#allocation3], 64, 64, 4
    $region9: #{tpu_custom_call.1} parent=1 // pred_fallthru
      _
    // Predicated region
    $region10: #{tpu_custom_call.1} parent=1 // pred_check
      _
    $region11: #{tpu_custom_call.1} parent=1 // pred_check_branch
      %27 = sbr.rel (0) target = $region13
    $region12: #{tpu_custom_call.1} parent=1 // pred_region
      _
    $region13: #{tpu_custom_call.1} parent=1 // pred_fallthru
      _
    // Predicated region
    $region14: #{tpu_custom_call.1} parent=1 // pred_check
      _
    $region15: #{tpu_custom_call.1} parent=1 // pred_check_branch
      %29 = sbr.rel (0) target = $region17
    $region16: #{tpu_custom_call.1} parent=1 // pred_region
      _
    $region17: #{tpu_custom_call.1} parent=1 // pred_fallthru
      _
    // Predicated region
    $region18: #{tpu_custom_call.1} parent=1 // pred_check
      _
    $region19: #{tpu_custom_call.1} parent=1 // pred_check_branch
      %31 = sbr.rel (0) target = $region21
    $region20: #{tpu_custom_call.1} parent=1 // pred_region
      _
    $region21: #{tpu_custom_call.1} parent=1 // pred_fallthru
      _
    // Predicated region
    $region22: #{tpu_custom_call.1} parent=1 // pred_check
      _
    $region23: #{tpu_custom_call.1} parent=1 // pred_check_branch
      %33 = sbr.rel (0) target = $region25
    $region24: #{tpu_custom_call.1} parent=1 // pred_region
      %34 = dma.done [#allocation3], 256
    $region25: #{tpu_custom_call.1} parent=1 // pred_fallthru
      _
    %v36 = vld [vmem:[%s0] sm:$0xff]
    %v37 = vpack.c.bf16 %v36, %v36
    %v38 = vld [vmem:[#allocation2] sm:$0xf]
    %v39 = vld [vmem:[#allocation2 + $0x4] sm:$0xf]
    %v40 = vld [vmem:[#allocation2 + $0x8] sm:$0xf]
    %v41 = vld [vmem:[#allocation2 + $0xc] sm:$0xf]
    %v42 = vld [vmem:[%s2] sm:$0x1]
    %v44 = vlaneseq
    %v45 = vshrl.u32 %v44, 7
    %v46 = vsub.s32 0, %v45
    %v47 = vrot.slane %v42, %v46
    %v53 = vunpack.c.l.b16 %v38
    %v54 = vunpack.c.l.b16 %v39
    %v55 = vunpack.c.l.b16 %v40
    %v56 = vunpack.c.l.b16 %v41
    %v57 = vpack.c.b16 %v54, %v53
    %v58 = vpack.c.b16 %v56, %v55
    %vm61 = vcmask 261120
    %v63 = vsel %vm61, %v37, 0
    %65 = vmatprep.subr.bf16.mxu0 0
    %66 = vmatpush1.bf16.msra.mxu0 %v57
    %67 = vmatprep.subr.bf16.mxu0 0
    %68 = vmatpush1.bf16.msra.mxu0 %v58
    %69 = vmatprep.subr.bf16.mxu0 0
    %70 = vmatpush1.bf16.msra.mxu0 0
    %71 = vmatprep.subr.bf16.mxu0 0
    %72 = vmatpush1.bf16.msra.mxu0 0
    %73 = vmatprep.subr.bf16.mxu0 0
    %74 = vmatpush1.bf16.msra.mxu0 0
    %75 = vmatprep.subr.bf16.mxu0 0
    %76 = vmatpush1.bf16.msra.mxu0 0
    %77 = vmatprep.subr.bf16.mxu0 0
    %78 = vmatpush1.bf16.msra.mxu0 0
    %79 = vmatprep.subr.bf16.mxu0 0
    %80 = vmatpush1.bf16.msra.mxu0 0
    %81 = vmatprep.subr.bf16.mxu0 0
    %82 = vmatpush1.bf16.msra.mxu0 0
    %83 = vmatprep.subr.bf16.mxu0 0
    %84 = vmatpush1.bf16.msra.mxu0 0
    %85 = vmatprep.subr.bf16.mxu0 0
    %86 = vmatpush1.bf16.msra.mxu0 0
    %87 = vmatprep.subr.bf16.mxu0 0
    %88 = vmatpush1.bf16.msra.mxu0 0
    %89 = vmatprep.subr.bf16.mxu0 0
    %90 = vmatpush1.bf16.msra.mxu0 0
    %91 = vmatprep.subr.bf16.mxu0 0
    %92 = vmatpush1.bf16.msra.mxu0 0
    %93 = vmatprep.subr.bf16.mxu0 0
    %94 = vmatpush1.bf16.msra.mxu0 0
    %95 = vmatprep.subr.bf16.mxu0 0
    %96 = vmatpush1.bf16.msra.mxu0 0
    %97 = vmatprep.mubr.bf16.mxu0 0
    %98 = vmatmul.mubr.bf16.gmra.mrb[0].mxu0 %v63
    %v99 = vpop.f32.mrb[0].mxu0
    %v100 = vadd.f32 %v47, %v99
    %v101 = vpop.f32.mrb[0].mxu0
    %v102 = vpop.f32.mrb[0].mxu0
    %v103 = vpop.f32.mrb[0].mxu0
    %104 = vdwg.mxu0
    %v105 = vmax.f32 %v100, 0.0
    %106 = vxpose.xlu0.b32.start [1/16] %v105, 128
    %107 = vxpose.xlu0.b32.cont [2/16] 0.0, 128
    %108 = vxpose.xlu0.b32.cont [3/16] 0.0, 128
    %109 = vxpose.xlu0.b32.cont [4/16] 0.0, 128
    %110 = vxpose.xlu0.b32.cont [5/16] 0.0, 128
    %111 = vxpose.xlu0.b32.cont [6/16] 0.0, 128
    %112 = vxpose.xlu0.b32.cont [7/16] 0.0, 128
    %113 = vxpose.xlu0.b32.cont [8/16] 0.0, 128
    %114 = vxpose.xlu0.b32.cont [9/16] 0.0, 128
    %115 = vxpose.xlu0.b32.cont [10/16] 0.0, 128
    %116 = vxpose.xlu0.b32.cont [11/16] 0.0, 128
    %117 = vxpose.xlu0.b32.cont [12/16] 0.0, 128
    %118 = vxpose.xlu0.b32.cont [13/16] 0.0, 128
    %119 = vxpose.xlu0.b32.cont [14/16] 0.0, 128
    %120 = vxpose.xlu0.b32.cont [15/16] 0.0, 128
    %121 = vxpose.xlu0.b32.end [16/16] 0.0, 128
    %v122 = vpop.trf.xlu0
    %v123 = vpop.trf.xlu0
    %v124 = vpop.trf.xlu0
    %v125 = vpop.trf.xlu0
    %v126 = vpop.trf.xlu0
    %v127 = vpop.trf.xlu0
    %v128 = vpop.trf.xlu0
    %v129 = vpop.trf.xlu0
    %v130 = vpop.trf.xlu0
    %v131 = vpop.trf.xlu0
    %v132 = vpop.trf.xlu0
    %v133 = vpop.trf.xlu0
    %v134 = vpop.trf.xlu0
    %v135 = vpop.trf.xlu0
    %v136 = vpop.trf.xlu0
    %v137 = vpop.trf.xlu0
    %v138 = vpack.c.bf16 %v123, %v122
    %v139 = vpack.c.bf16 %v125, %v124
    %v140 = vpack.c.bf16 %v127, %v126
    %v141 = vpack.c.bf16 %v129, %v128
    %v142 = vpack.c.bf16 %v131, %v130
    %v143 = vpack.c.bf16 %v133, %v132
    %v144 = vpack.c.bf16 %v135, %v134
    %v145 = vpack.c.bf16 %v137, %v136
    %v146 = vld [vmem:[%s3] sm:$0xf]
    %v147 = vld [vmem:[%s4] sm:$0xff]
    %149 = vset.pattern.permute.xlu0 0
    %150 = vperm.xlu0 %149, %v147
    %v151 = vpop.permute.xlu0 %150
    %153 = vmatprep.subr.bf16.mxu0 0
    %154 = vmatpush1.bf16.msra.mxu0 %v138
    %155 = vmatprep.subr.bf16.mxu0 0
    %156 = vmatpush1.bf16.msra.mxu0 %v139
    %157 = vmatprep.subr.bf16.mxu0 0
    %158 = vmatpush1.bf16.msra.mxu0 %v140
    %159 = vmatprep.subr.bf16.mxu0 0
    %160 = vmatpush1.bf16.msra.mxu0 %v141
    %161 = vmatprep.subr.bf16.mxu0 0
    %162 = vmatpush1.bf16.msra.mxu0 %v142
    %163 = vmatprep.subr.bf16.mxu0 0
    %164 = vmatpush1.bf16.msra.mxu0 %v143
    %165 = vmatprep.subr.bf16.mxu0 0
    %166 = vmatpush1.bf16.msra.mxu0 %v144
    %167 = vmatprep.subr.bf16.mxu0 0
    %168 = vmatpush1.bf16.msra.mxu0 %v145
    %169 = vmatprep.subr.bf16.mxu0 0
    %170 = vmatpush1.bf16.msra.mxu0 0
    %171 = vmatprep.subr.bf16.mxu0 0
    %172 = vmatpush1.bf16.msra.mxu0 0
    %173 = vmatprep.subr.bf16.mxu0 0
    %174 = vmatpush1.bf16.msra.mxu0 0
    %175 = vmatprep.subr.bf16.mxu0 0
    %176 = vmatpush1.bf16.msra.mxu0 0
    %177 = vmatprep.subr.bf16.mxu0 0
    %178 = vmatpush1.bf16.msra.mxu0 0
    %179 = vmatprep.subr.bf16.mxu0 0
    %180 = vmatpush1.bf16.msra.mxu0 0
    %181 = vmatprep.subr.bf16.mxu0 0
    %182 = vmatpush1.bf16.msra.mxu0 0
    %183 = vmatprep.subr.bf16.mxu0 0
    %184 = vmatpush1.bf16.msra.mxu0 0
    %185 = vmatprep.mubr.bf16.mxu0 0
    %186 = vmatmul.mubr.bf16.gmra.mrb[0].mxu0 %v146
    %v187 = vpop.f32.mrb[0].mxu0
    %v188 = vadd.f32 %v151, %v187
    %v189 = vpop.f32.mrb[0].mxu0
    %v190 = vpop.f32.mrb[0].mxu0
    %v191 = vpop.f32.mrb[0].mxu0
    %192 = vdwg.mxu0
    %vm193 = vcmask 64512
    %194 = vst.msk [vmem:[#allocation5] sm:$0xff] %vm193, %v188
    // Predicated region
    $region26: #{tpu_custom_call.1} parent=1 // pred_check
      _
    $region27: #{tpu_custom_call.1} parent=1 // pred_check_branch
      %196 = sbr.rel (0) target = $region29
    $region28: #{tpu_custom_call.1} parent=1 // pred_region
      %s198 = ssub.s32 128, 128
      %199 = vsyncadd [#allocation4], %s198
      %s201 = sshll.u32 [#allocation5], 4
      %s202 = int_to_ptr.vmem [resolvable:$true] %s201
      %204 = dma.vmem_to_hbm [thread:$0]  %s202, 128, %s5, [#allocation4]
    $region29: #{tpu_custom_call.1} parent=1 // pred_fallthru
      _
    // Predicated region
    $region30: #{tpu_custom_call.1} parent=1 // pred_check
      _
    $region31: #{tpu_custom_call.1} parent=1 // pred_check_branch
      %206 = sbr.rel (0) target = $region33
    $region32: #{tpu_custom_call.1} parent=1 // pred_region
      %207 = dma.done [#allocation4], 128
    $region33: #{tpu_custom_call.1} parent=1 // pred_fallthru
      _
    %208 = vsyncpa [#allocation3], 1
    %209 = vsyncpa [#allocation4], 1

</llo_original>
